<compile_context>
chip_gen: v6e
topology: v6e:2x2x1
jax: 0.10.0
libtpu: 0.0.40
codegen_flags: <defaults>
</compile_context>

<pallas_src>
import functools
import math

import jax
import jax.numpy as jnp
from jax import lax
from jax.experimental import pallas as pl
from jax.experimental.pallas import tpu as pltpu

_LANE = 128
# 1024 rows * 128 lanes * f32: ~4 MiB of blocks per grid step, ~8 MiB double
# buffered -- inside the default scoped-VMEM limit on v5e (16 MiB), v6e and
# v7x (32 MiB).  (v6e-only deployments could raise this to 2048.)
_MAX_TILE_ROWS = 1024


def _round_up(x: int, m: int) -> int:
    return (x + m - 1) // m * m


# --------------------------------------------------------------------------
# Shared blend math (used by both kernels and the pure-JAX reference)
# --------------------------------------------------------------------------
def _blend_math(img, snow_total, blend):
    """clip(blend*img + (1-blend)*max(img, 1.5*gray + 0.5) + snow_total, 0, 1).

    img: (3, ...) float32; snow_total: (...) float32 (broadcast over channels).
    """
    gray = 0.299 * img[0] + 0.587 * img[1] + 0.114 * img[2]
    whitened = 1.5 * gray + 0.5
    base = blend * img + (1.0 - blend) * jnp.maximum(img, whitened)
    return jnp.clip(base + snow_total, 0.0, 1.0)


# --------------------------------------------------------------------------
# Pallas kernels
# --------------------------------------------------------------------------
def _snow_blend_kernel_fused(img_ref, snow_ref, mir_ref, out_ref, *, blend: float):
    """Fused blend: the 180-degree snow flip is done in-kernel.

    img_ref:  (3, T, 128) forward image block
    snow_ref: (T, 128)    forward snow block
    mir_ref:  (T, 128)    mirrored snow block (grid-1-r); reversed in-kernel
    """
    img = img_ref[...].astype(jnp.float32)
    snow = snow_ref[...].astype(jnp.float32)
    mir = jnp.flip(mir_ref[...], axis=(0, 1)).astype(jnp.float32)
    out_ref[...] = _blend_math(img, snow + mir, blend).astype(out_ref.dtype)


def _snow_blend_kernel_plain(img_ref, snow_ref, out_ref, *, blend: float):
    """Fallback blend: snow_total (= snow + flip(snow)) is precomputed by XLA."""
    img = img_ref[...].astype(jnp.float32)
    out_ref[...] = _blend_math(img, snow_ref[...].astype(jnp.float32),
                               blend).astype(out_ref.dtype)


@functools.lru_cache(maxsize=None)
def _build_blend_call(c: int, rows: int, rows_mir: int, tile: int,
                      dtype_name: str, blend: float, fused: bool):
    grid = pl.cdiv(rows, tile)
    out_spec = pl.BlockSpec((c, tile, _LANE), lambda r: (0, r, 0))
    if fused:
        kernel = functools.partial(_snow_blend_kernel_fused, blend=blend)
        in_specs = [
            pl.BlockSpec((c, tile, _LANE), lambda r: (0, r, 0)),
            pl.BlockSpec((tile, _LANE), lambda r: (r, 0)),
            # mirrored snow block; (rows_mir = grid*tile so never clipped)
            pl.BlockSpec((tile, _LANE), lambda r, g=grid: (g - 1 - r, 0)),
        ]
    else:
        kernel = functools.partial(_snow_blend_kernel_plain, blend=blend)
        in_specs = [
            pl.BlockSpec((c, tile, _LANE), lambda r: (0, r, 0)),
            pl.BlockSpec((tile, _LANE), lambda r: (r, 0)),
        ]
    return pl.pallas_call(
        kernel,
        out_shape=jax.ShapeDtypeStruct((c, rows, _LANE), jnp.dtype(dtype_name)),
        grid=(grid,),
        in_specs=in_specs,
        out_specs=out_spec,
        compiler_params=pltpu.CompilerParams(
            dimension_semantics=("parallel",),
        ),
    )


def _pick_tile_rows(rows: int) -> int:
    """Pick the sublane tile for the (rows, 128) view.

    Constraints / goals:
      * tile % 8 == 0, or tile == rows (full dim) for tiny images;
      * tile <= _MAX_TILE_ROWS (VMEM);
      * >= 2 grid steps when rows >= 16 so v7x's two TensorCores share the work;
      * prefer a tile that divides rows exactly (no boundary clipping and no
        mirrored-snow pad), but only if it is not much smaller than the cap.
    """
    if rows <= 8 or (rows < 16 and rows % 8 != 0):
        return rows
    cap = min(_MAX_TILE_ROWS, _round_up(rows, 8))
    if rows >= 16:
        cap = min(cap, _round_up(pl.cdiv(rows, 2), 8))
    cap = max(8, (cap // 8) * 8)
    for t in range(cap, 7, -8):
        if rows % t == 0 and 2 * t >= cap:
            return t
    return cap


def _apply_snow_blend(img: jax.Array, snow: jax.Array, blend: float,
                      *, fused: bool = True) -> jax.Array:
    """Tiled lane-dense Pallas blend.  img: (3, H, W); snow: (H, W) float."""
    c, h, w = img.shape
    p = h * w
    rows = pl.cdiv(p, _LANE)
    pad_px = rows * _LANE - p          # 0 for all H*W that are multiples of 128

    tile = _pick_tile_rows(rows)
    grid = pl.cdiv(rows, tile)
    rows_mir = grid * tile             # mirrored snow view is never clipped

    img_flat = img.reshape(c, p)
    snow_flat = snow.reshape(p).astype(jnp.float32)
    dtype_name = jnp.dtype(img.dtype).name

    if fused:
        img_in = img_flat if pad_px == 0 else jnp.pad(img_flat, ((0, 0), (0, pad_px)))
        snow_fwd = snow_flat if pad_px == 0 else jnp.pad(snow_flat, ((0, pad_px),))
        front = rows_mir * _LANE - p   # front pad aligns flip with the grid
        snow_mir = snow_flat if front == 0 else jnp.pad(snow_flat, ((front, 0),))
        call = _build_blend_call(c, rows, rows_mir, tile, dtype_name,
                                 float(blend), True)
        out = call(img_in.reshape(c, rows, _LANE),
                   snow_fwd.reshape(rows, _LANE),
                   snow_mir.reshape(rows_mir, _LANE))
        if pad_px:
            return out.reshape(c, rows * _LANE)[:, :p].reshape(c, h, w)
        return out.reshape(c, h, w)

    # Conservative fallback: flip+add in XLA, fully padded tiles (no clipping).
    rows_pad = rows_mir
    pad2 = rows_pad * _LANE - p
    snow_total = snow_flat + snow_flat[::-1]
    img_in = img_flat if pad2 == 0 else jnp.pad(img_flat, ((0, 0), (0, pad2)))
    snow_in = snow_total if pad2 == 0 else jnp.pad(snow_total, ((0, pad2),))
    call = _build_blend_call(c, rows_pad, rows_pad, tile, dtype_name,
                             float(blend), False)
    out = call(img_in.reshape(c, rows_pad, _LANE),
               snow_in.reshape(rows_pad, _LANE))
    if pad2:
        return out.reshape(c, rows_pad * _LANE)[:, :p].reshape(c, h, w)
    return out.reshape(c, h, w)


# --------------------------------------------------------------------------
# Pure-JAX reference of the blend (includes the flip), used for validation
# --------------------------------------------------------------------------
def _blend_reference(img, snow, blend):
    snow_total = snow + jnp.flip(snow, axis=(0, 1))
    return _blend_math(img.astype(jnp.float32), snow_total,
                       float(blend)).astype(img.dtype)


@functools.lru_cache(maxsize=1)
def _fused_blend_supported() -> bool:
    """Compile & numerically validate the fused (in-kernel flip) blend once.

    Covers: trivial single-block shape and an odd shape exercising boundary
    clipping + the mirrored-snow front pad.  Any failure -> use the fallback.
    """
    try:
        for h, w in ((32, 32), (40, 56)):
            kimg, ksnow = jax.random.split(jax.random.PRNGKey(42))
            img = jax.random.uniform(kimg, (3, h, w), jnp.float32)
            snow = jax.random.uniform(ksnow, (h, w), jnp.float32)
            got = jax.block_until_ready(
                _apply_snow_blend(img, snow, 0.7, fused=True))
            ref = _blend_reference(img, snow, 0.7)
            if not bool(jnp.max(jnp.abs(got - ref)) < 1e-5):
                return False
        return True
    except Exception:
        return False


# --------------------------------------------------------------------------
# Snow-layer preparation (plain JAX; tiny single-channel side computation)
# --------------------------------------------------------------------------
def _clipped_zoom(x: jax.Array, zoom_factor: float) -> jax.Array:
    h, w = x.shape
    ch = math.ceil(h / zoom_factor)
    cw = math.ceil(w / zoom_factor)
    top = (h - ch) // 2
    left = (w - cw) // 2
    crop = x[top:top + ch, left:left + cw]
    zh = int(round(ch * zoom_factor))
    zw = int(round(cw * zoom_factor))
    # TODO(synk): jax.image.resize(linear) approximates scipy.ndimage.zoom(order=1)
    zoomed = jax.image.resize(crop, (zh, zw), method="linear")
    tt = (zh - h) // 2
    tl = (zw - w) // 2
    return zoomed[tt:tt + h, tl:tl + w]


def _motion_blur(x: jax.Array, ks: int, angle_deg: jax.Array) -> jax.Array:
    """kornia-style motion blur, direction=0 (uniform line kernel at `angle`)."""
    half = (ks - 1) / 2.0
    theta = jnp.deg2rad(angle_deg)
    offs = jnp.arange(ks, dtype=jnp.float32) - half
    ys, xs = jnp.meshgrid(offs, offs, indexing="ij")
    dx, dy = jnp.cos(theta), jnp.sin(theta)
    along = xs * dx + ys * dy
    perp = -xs * dy + ys * dx
    # TODO(synk): approximates kornia.get_motion_kernel2d (rotated AA line).
    kern = jnp.clip(1.0 - jnp.abs(perp), 0.0, 1.0)
    kern = kern * (jnp.abs(along) <= half + 0.5).astype(jnp.float32)
    kern = kern / jnp.sum(kern)
    # TODO(synk): 1-channel conv under-utilizes the MXU; a VPU shifted-add
    # Pallas kernel would be faster for large images (snow-prep only).
    out = lax.conv_general_dilated(
        x[None, None], kern[None, None],
        window_strides=(1, 1), padding="SAME",
        dimension_numbers=("NCHW", "OIHW", "NCHW"),
    )
    return out[0, 0]


@functools.partial(jax.jit, static_argnames=("mix", "fused"))
def _snow_forward(img: jax.Array, key: jax.Array, *, mix, fused: bool) -> jax.Array:
    loc, zoom_factor, threshold, blur_radius, blend = mix
    _, h, w = img.shape
    k_noise, k_angle = jax.random.split(key)

    snow = loc + 0.3 * jax.random.normal(k_noise, (h, w), jnp.float32)
    snow = _clipped_zoom(snow, float(zoom_factor))
    snow = jnp.where(snow < threshold, 0.0, snow)
    snow = jnp.clip(snow, 0.0, 1.0)
    angle = jax.random.uniform(k_angle, (), jnp.float32, -135.0, -45.0)
    snow = _motion_blur(snow, int(blur_radius) * 2 + 1, angle)

    # The flip(snow) + per-pixel blend are fused into the Pallas kernel.
    return _apply_snow_blend(img, snow, float(blend), fused=fused)


# --------------------------------------------------------------------------
# Public module
# --------------------------------------------------------------------------
class Snow:
    """JAX/Pallas port of torch_uncertainty's Snow corruption (unbatched CHW)."""

    batched = False

    _MIX = [
        (0.1, 3.0, 0.5, 4, 0.8),
        (0.2, 2.0, 0.5, 4, 0.7),
        (0.55, 4.0, 0.9, 8, 0.7),
        (0.55, 4.5, 0.85, 8, 0.65),
        (0.55, 2.5, 0.85, 12, 0.55),
    ]

    def __init__(self, severity: int, seed: int | None = None) -> None:
        if not isinstance(severity, int):
            raise TypeError("Severity must be an integer.")
        if not 0 <= severity <= 5:
            raise ValueError("Severity must be between 0 and 5.")
        self.severity = severity
        self.mix = self._MIX[severity - 1] if severity > 0 else None
        self._key = jax.random.PRNGKey(0 if seed is None else seed)

    def __repr__(self) -> str:
        return self.__class__.__name__ + f"(severity={self.severity})"

    def __call__(self, img: jax.Array) -> jax.Array:
        if self.severity == 0:
            return img
        if img.ndim != 3 or img.shape[0] != 3:
            raise ValueError("Snow expects an unbatched RGB image (3, H, W).")
        self._key, sub = jax.random.split(self._key)
        if _fused_blend_supported():
            try:
                return _snow_forward(img, sub, mix=self.mix, fused=True)
            except Exception:
                pass  # fall through to the conservative path
        return _snow_forward(img, sub, mix=self.mix, fused=False)

    forward = __call__


if __name__ == "__main__":
    key = jax.random.PRNGKey(0)
    img = jax.random.uniform(key, (3, 64, 64), dtype=jnp.float32)

    # Full forward once.
    op = Snow(severity=3, seed=0)
    out = jax.block_until_ready(op(img))
    assert out.shape == img.shape and out.dtype == img.dtype
    assert bool(jnp.all((out >= 0.0) & (out <= 1.0)))

    # severity 0 is the identity.
    assert jnp.array_equal(Snow(0, seed=0)(img), img)

    # Validate the blend kernel (fused flip if supported on this backend, else
    # the fallback) against a pure-JAX reference with a deterministic snow.
    fused = _fused_blend_supported()
    snow = jax.random.uniform(jax.random.PRNGKey(1), (64, 64), jnp.float32)
    got = jax.block_until_ready(_apply_snow_blend(img, snow, 0.7, fused=fused))
    ref = _blend_reference(img, snow, 0.7)
    assert float(jnp.max(jnp.abs(got - ref))) < 1e-5

    # Odd (non-multiple-of-128) spatial shape: exercises image end-pad,
    # boundary-clipped blocks and the mirrored-snow front pad.
    img2 = jax.random.uniform(jax.random.PRNGKey(2), (3, 40, 56), jnp.float32)
    snow2 = jax.random.uniform(jax.random.PRNGKey(3), (40, 56), jnp.float32)
    got2 = jax.block_until_ready(_apply_snow_blend(img2, snow2, 0.7, fused=fused))
    ref2 = _blend_reference(img2, snow2, 0.7)
    assert float(jnp.max(jnp.abs(got2 - ref2))) < 1e-5

    # The always-available fallback path must also be exact.
    got3 = jax.block_until_ready(_apply_snow_blend(img, snow, 0.7, fused=False))
    assert float(jnp.max(jnp.abs(got3 - ref))) < 1e-5

    print("KERNEL_OK")
</pallas_src>

<mosaic_0001>
module attributes {stable_mosaic.version = 11 : i64} {
  func.func @_snow_blend_kernel_plain(%arg0: i32, %arg1: memref<3x16x128xf32, #tpu.memory_space<vmem>>, %arg2: memref<16x128xf32, #tpu.memory_space<vmem>>, %arg3: memref<3x16x128xf32, #tpu.memory_space<vmem>>) attributes {dimension_semantics = [#tpu.dimension_semantics<parallel>], iteration_bounds = array<i64: 2>, scalar_prefetch = 0 : i64, scratch_operands = 0 : i64, tpu.core_type = #tpu.core_type<tc>, window_params = [{transform_indices = @transform_0, window_bounds = array<i64: 3, 16, 128>}, {transform_indices = @transform_1, window_bounds = array<i64: 16, 128>}, {transform_indices = @transform_2, window_bounds = array<i64: 3, 16, 128>}]} {
    %c0 = arith.constant 0 : index
    %c0_0 = arith.constant 0 : index
    %c0_1 = arith.constant 0 : index
    %0 = vector.load %arg1[%c0, %c0_0, %c0_1] : memref<3x16x128xf32, #tpu.memory_space<vmem>>, vector<3x16x128xf32>
    %c0_2 = arith.constant 0 : index
    %c0_3 = arith.constant 0 : index
    %1 = vector.load %arg2[%c0_2, %c0_3] : memref<16x128xf32, #tpu.memory_space<vmem>>, vector<16x128xf32>
    %2 = vector.extract_strided_slice %0 {offsets = [0, 0, 0], sizes = [1, 16, 128], strides = [1, 1, 1]} : vector<3x16x128xf32> to vector<1x16x128xf32>
    %3 = vector.shape_cast %2 : vector<1x16x128xf32> to vector<16x128xf32>
    %cst = arith.constant 2.990000e-01 : f32
    %4 = vector.broadcast %cst : f32 to vector<16x128xf32>
    %5 = arith.mulf %4, %3 : vector<16x128xf32>
    %6 = vector.extract_strided_slice %0 {offsets = [1, 0, 0], sizes = [1, 16, 128], strides = [1, 1, 1]} : vector<3x16x128xf32> to vector<1x16x128xf32>
    %7 = vector.shape_cast %6 : vector<1x16x128xf32> to vector<16x128xf32>
    %cst_4 = arith.constant 5.870000e-01 : f32
    %8 = vector.broadcast %cst_4 : f32 to vector<16x128xf32>
    %9 = arith.mulf %8, %7 : vector<16x128xf32>
    %10 = arith.addf %5, %9 : vector<16x128xf32>
    %11 = vector.extract_strided_slice %0 {offsets = [2, 0, 0], sizes = [1, 16, 128], strides = [1, 1, 1]} : vector<3x16x128xf32> to vector<1x16x128xf32>
    %12 = vector.shape_cast %11 : vector<1x16x128xf32> to vector<16x128xf32>
    %cst_5 = arith.constant 1.140000e-01 : f32
    %13 = vector.broadcast %cst_5 : f32 to vector<16x128xf32>
    %14 = arith.mulf %13, %12 : vector<16x128xf32>
    %15 = arith.addf %10, %14 : vector<16x128xf32>
    %cst_6 = arith.constant 1.500000e+00 : f32
    %16 = vector.broadcast %cst_6 : f32 to vector<16x128xf32>
    %17 = arith.mulf %16, %15 : vector<16x128xf32>
    %cst_7 = arith.constant 5.000000e-01 : f32
    %18 = vector.broadcast %cst_7 : f32 to vector<16x128xf32>
    %19 = arith.addf %17, %18 : vector<16x128xf32>
    %cst_8 = arith.constant 0.699999988 : f32
    %20 = vector.broadcast %cst_8 : f32 to vector<3x16x128xf32>
    %21 = arith.mulf %20, %0 : vector<3x16x128xf32>
    %22 = vector.shape_cast %19 : vector<16x128xf32> to vector<1x16x128xf32>
    %23 = vector.broadcast %22 : vector<1x16x128xf32> to vector<3x16x128xf32>
    %24 = arith.maximumf %0, %23 : vector<3x16x128xf32>
    %cst_9 = arith.constant 3.000000e-01 : f32
    %25 = vector.broadcast %cst_9 : f32 to vector<3x16x128xf32>
    %26 = arith.mulf %25, %24 : vector<3x16x128xf32>
    %27 = arith.addf %21, %26 : vector<3x16x128xf32>
    %28 = vector.shape_cast %1 : vector<16x128xf32> to vector<1x16x128xf32>
    %29 = vector.broadcast %28 : vector<1x16x128xf32> to vector<3x16x128xf32>
    %30 = arith.addf %27, %29 : vector<3x16x128xf32>
    %cst_10 = arith.constant 0.000000e+00 : f32
    %cst_11 = arith.constant 1.000000e+00 : f32
    %31 = vector.broadcast %cst_10 : f32 to vector<3x16x128xf32>
    %32 = arith.maximumf %31, %30 : vector<3x16x128xf32>
    %33 = vector.broadcast %cst_11 : f32 to vector<3x16x128xf32>
    %34 = arith.minimumf %33, %32 : vector<3x16x128xf32>
    %c0_12 = arith.constant 0 : index
    %c0_13 = arith.constant 0 : index
    %c0_14 = arith.constant 0 : index
    %35 = vector.load %arg3[%c0_12, %c0_13, %c0_14] : memref<3x16x128xf32, #tpu.memory_space<vmem>>, vector<3x16x128xf32>
    tpu.vector_store %arg3[%c0_12, %c0_13, %c0_14], %34 {strides = array<i32>} : memref<3x16x128xf32, #tpu.memory_space<vmem>>, vector<3x16x128xf32>,
    return
  }
  func.func @transform_0(%arg0: i32) -> (i32, i32, i32) {
    %c0_i32 = arith.constant 0 : i32
    %c0_i32_0 = arith.constant 0 : i32
    %c0_i32_1 = arith.constant 0 : i32
    return %c0_i32, %arg0, %c0_i32_0 : i32, i32, i32
  }
  func.func @transform_1(%arg0: i32) -> (i32, i32) {
    %c0_i32 = arith.constant 0 : i32
    %c0_i32_0 = arith.constant 0 : i32
    return %arg0, %c0_i32 : i32, i32
  }
  func.func @transform_2(%arg0: i32) -> (i32, i32, i32) {
    %c0_i32 = arith.constant 0 : i32
    %c0_i32_0 = arith.constant 0 : i32
    %c0_i32_1 = arith.constant 0 : i32
    return %c0_i32, %arg0, %c0_i32_0 : i32, i32, i32
  }
}

</mosaic_0001>

<llo_original>
// kernel: squeeze.17
$region0: #{squeeze.17}
  %s0 = inlined_call_operand.vmem [shape: f32[64,64], index: 0, kind: input, shape index: {}]
  %s1 = inlined_call_operand.vmem [shape: f32[4096], index: 1, kind: output, shape index: {}]
  %v2 = vld [vmem:[%s0] ss:$2 sm:$0xff]
  %vm3 = vcmask 523264
  %4 = vst.msk [vmem:[%s1] sm:$0xff] %vm3, %v2
  %s5 = scalar_lea.vmem %s0, 16
  %v6 = vld [vmem:[%s5] ss:$2 sm:$0xff]
  %vm7 = vcmask 523264
  %s8 = scalar_lea.vmem %s1, 8
  %9 = vst.msk [vmem:[%s8] sm:$0xff] %vm7, %v6
  %s10 = scalar_lea.vmem %s0, 32
  %v11 = vld [vmem:[%s10] ss:$2 sm:$0xff]
  %vm12 = vcmask 523264
  %s13 = scalar_lea.vmem %s1, 16
  %14 = vst.msk [vmem:[%s13] sm:$0xff] %vm12, %v11
  %s15 = scalar_lea.vmem %s0, 48
  %v16 = vld [vmem:[%s15] ss:$2 sm:$0xff]
  %vm17 = vcmask 523264
  %s18 = scalar_lea.vmem %s1, 24
  %19 = vst.msk [vmem:[%s18] sm:$0xff] %vm17, %v16
  %s20 = scalar_lea.vmem %s0, 1
  %v21 = vld [vmem:[%s20] ss:$2 sm:$0xff]
  %22 = vrot.lane.b32.xlu0 %v21, 64
  %v23 = vpop.permute.xlu0 %22
  %vm24 = vcmask 1048064
  %25 = vst.msk [vmem:[%s1] sm:$0xff] %vm24, %v23
  %s26 = scalar_lea.vmem %s0, 17
  %v27 = vld [vmem:[%s26] ss:$2 sm:$0xff]
  %28 = vrot.lane.b32.xlu0 %v27, 64
  %v29 = vpop.permute.xlu0 %28
  %vm30 = vcmask 1048064
  %s31 = scalar_lea.vmem %s1, 8
  %32 = vst.msk [vmem:[%s31] sm:$0xff] %vm30, %v29
  %s33 = scalar_lea.vmem %s0, 33
  %v34 = vld [vmem:[%s33] ss:$2 sm:$0xff]
  %35 = vrot.lane.b32.xlu0 %v34, 64
  %v36 = vpop.permute.xlu0 %35
  %vm37 = vcmask 1048064
  %s38 = scalar_lea.vmem %s1, 16
  %39 = vst.msk [vmem:[%s38] sm:$0xff] %vm37, %v36
  %s40 = scalar_lea.vmem %s0, 49
  %v41 = vld [vmem:[%s40] ss:$2 sm:$0xff]
  %42 = vrot.lane.b32.xlu0 %v41, 64
  %v43 = vpop.permute.xlu0 %42
  %vm44 = vcmask 1048064
  %s45 = scalar_lea.vmem %s1, 24
  %46 = vst.msk [vmem:[%s45] sm:$0xff] %vm44, %v43

// kernel: _snow_forward.3
$region0: #{_snow_forward.3}
  #allocation0 [shape = 'u32[]', space=smem, size = 0x4, offset = 0x4, fixed_abs, tag = 'smem constant byte address 0x4 - core index']
  #allocation1 [shape = 'u32[144,128]{1,0:T(1,128)}', space=vmem, size = 0x12000, scoped, tag = 'internal scratch']
  %s0 = inlined_call_operand.vmem [shape: f32[3,32,128], index: 0, kind: input, shape index: {}]
  %s1 = inlined_call_operand.vmem [shape: f32[32,128], index: 1, kind: input, shape index: {}]
  %s2 = inlined_call_operand.vmem [shape: f32[3,32,128], index: 2, kind: output, shape index: {}]
  %s3 = sld [smem:[#allocation0]]
  $region113: #{_snow_forward.3} parent=0
    _
  %s5 = ssub.s32 1, %s3
  %s6 = scalar_select 0, %s5, %s3
  $region1: #{_snow_forward.3} parent=0
    #allocation2 [shape = 'u8[49152]{0}', space=vmem, size = 0xc000, scoped, tag = 'input window, operand 0']
    #allocation3 [shape = 'u8[49152]{0}', space=vmem, size = 0xc000, scoped, tag = 'output window, operand 0']
    loop: start=0, step=1, limit=4
    $region2: #{_snow_forward.3} parent=1 // loop_pre_header
      _
    $region3: #{_snow_forward.3} parent=1 // loop_header
      %s8 = sphi 0, %s12
      %p9 = scmp.ge.s32.totalorder %s8, 4
      %s18 = sphi 0, %s20
      %s21 = sphi 0, %s18
      %s22 = sphi 0, %s21
      %s38 = sphi 0, %s22
      %s44 = sphi 0, %s46
      %s47 = sphi 0, %s44
      %s48 = sphi 0, %s47
      %s64 = sphi 0, %s48
      %s70 = sphi 0, %s72
      %s73 = sphi 0, %s70
      %s74 = sphi 0, %s73
      %s90 = sphi 0, %s74
    $region4: #{_snow_forward.3} parent=1 // loop_header_branch
      %11 = sbr.rel (%p9) target = $region8
    $region5: #{_snow_forward.3} parent=1 // loop_body
      %s13 = ssub.s32 %s8, 1
      %s14 = ssub.s32 %s8, 2
      %s15 = sadd.s32 %s8, 1
      %s16 = ssub.s32 %s8, %s15
      %p17 = scmp.eq.s32.totalorder %s16, 0
      %s19 = sadd.s32 %s18, 1
      %s20 = scalar_select %p17, %s18, %s19
      %p23 = pneg %p17
      %p24 = scmp.eq.s32.totalorder %s8, 1
      %p25 = por %p23, %p24
      %p26 = scmp.ne.s32.totalorder %s18, %s21
      %p27 = scmp.eq.s32.totalorder %s8, 0
      %p28 = por %p26, %p27
      %p29 = scmp.ne.s32.totalorder %s18, %s21
      %p30 = scmp.eq.s32.totalorder %s13, 1
      %p31 = por %p29, %p30
      %p32 = scmp.ne.s32.totalorder %s21, %s22
      %p33 = scmp.eq.s32.totalorder %s13, 0
      %p34 = por %p32, %p33
      %p35 = scmp.ne.s32.totalorder %s21, %s22
      %p36 = scmp.eq.s32.totalorder %s14, 1
      %p37 = por %p35, %p36
      %p39 = scmp.ne.s32.totalorder %s22, %s38
      %p40 = scmp.eq.s32.totalorder %s14, 0
      %p41 = por %p39, %p40
      %s42 = ssub.s32 %s8, %s15
      %p43 = scmp.eq.s32.totalorder %s42, 0
      %s45 = sadd.s32 %s44, 1
      %s46 = scalar_select %p43, %s44, %s45
      %p49 = pneg %p43
      %p50 = scmp.eq.s32.totalorder %s8, 1
      %p51 = por %p49, %p50
      %p52 = scmp.ne.s32.totalorder %s44, %s47
      %p53 = scmp.eq.s32.totalorder %s8, 0
      %p54 = por %p52, %p53
      %p55 = scmp.ne.s32.totalorder %s44, %s47
      %p56 = scmp.eq.s32.totalorder %s13, 1
      %p57 = por %p55, %p56
      %p58 = scmp.ne.s32.totalorder %s47, %s48
      %p59 = scmp.eq.s32.totalorder %s13, 0
      %p60 = por %p58, %p59
      %p61 = scmp.ne.s32.totalorder %s47, %s48
      %p62 = scmp.eq.s32.totalorder %s14, 1
      %p63 = por %p61, %p62
      %p65 = scmp.ne.s32.totalorder %s48, %s64
      %p66 = scmp.eq.s32.totalorder %s14, 0
      %p67 = por %p65, %p66
      %s68 = ssub.s32 %s8, %s15
      %p69 = scmp.eq.s32.totalorder %s68, 0
      %s71 = sadd.s32 %s70, 1
      %s72 = scalar_select %p69, %s70, %s71
      %p75 = pneg %p69
      %p76 = scmp.eq.s32.totalorder %s8, 1
      %p77 = por %p75, %p76
      %p78 = scmp.ne.s32.totalorder %s70, %s73
      %p79 = scmp.eq.s32.totalorder %s8, 0
      %p80 = por %p78, %p79
      %p81 = scmp.ne.s32.totalorder %s70, %s73
      %p82 = scmp.eq.s32.totalorder %s13, 1
      %p83 = por %p81, %p82
      %p84 = scmp.ne.s32.totalorder %s73, %s74
      %p85 = scmp.eq.s32.totalorder %s13, 0
      %p86 = por %p84, %p85
      %p87 = scmp.ne.s32.totalorder %s73, %s74
      %p88 = scmp.eq.s32.totalorder %s14, 1
      %p89 = por %p87, %p88
      %p91 = scmp.ne.s32.totalorder %s74, %s90
      %p92 = scmp.eq.s32.totalorder %s14, 0
      %p93 = por %p91, %p92
      %p94 = scmp.le.s32.totalorder 1, %s8
      %p95 = scmp.lt.s32.totalorder %s8, 3
      %p96 = pnand %p94, %p95
      %p97 = pneg %p96
      // Predicated region
      $region9: #{_snow_forward.3} parent=5 // pred_check
        _
      $region10: #{_snow_forward.3} parent=5 // pred_check_branch
        %99 = sbr.rel (%p96) target = $region12
      $region11: #{_snow_forward.3} parent=5 // pred_region
        %s100 = ssub.s32 %s8, 1
      $region12: #{_snow_forward.3} parent=5 // pred_fallthru
        _
      %p101 = scmp.lt.s32.totalorder %s8, 2
      // Predicated region
      $region13: #{_snow_forward.3} parent=5 // pred_check
        %p102 = pneg %p101
      $region14: #{_snow_forward.3} parent=5 // pred_check_branch
        %104 = sbr.rel (%p102) target = $region16
      $region15: #{_snow_forward.3} parent=5 // pred_region
        // Predicated region
        $region17: #{_snow_forward.3} parent=15 // pred_check
          %p105 = pneg %p28
        $region18: #{_snow_forward.3} parent=15 // pred_check_branch
          %107 = sbr.rel (%p105) target = $region20
        $region19: #{_snow_forward.3} parent=15 // pred_region
          %s108 = sand.u32 %s18, 1
          %s109 = sand.u32 %s18, 1
          %s110 = smul.addr %s109, 48
          %s111 = scalar_lea.vmem [#allocation2], %s110
          %s112 = smul.u32 2, %s8
          %s113 = smul.addr %s112, 8
          %s114 = scalar_lea.vmem %s0, %s113
          // Predicated region
          $region21: #{_snow_forward.3} parent=19 // pred_check
            _
          $region22: #{_snow_forward.3} parent=19 // pred_check_branch
            %116 = sbr.rel (0) target = $region24
          $region23: #{_snow_forward.3} parent=19 // pred_region
            // Predicated region
            $region25: #{_snow_forward.3} parent=23 // pred_check
              _
            $region26: #{_snow_forward.3} parent=23 // pred_check_branch
              %118 = sbr.rel (0) target = $region28
            $region27: #{_snow_forward.3} parent=23 // pred_region
              // Predicated region
              $region40: #{_snow_forward.3} parent=27 // pred_check
                _
              $region41: #{_snow_forward.3} parent=27 // pred_check_branch
                %144 = sbr.rel (0) target = $region43
              $region42: #{_snow_forward.3} parent=27 // pred_region
                loop: start=0, step=1, limit=1
                $region44: #{_snow_forward.3} parent=42 // loop_pre_header
                  _
                $region45: #{_snow_forward.3} parent=42 // loop_header
                  %s146 = sphi 0, %s150
                  %p147 = scmp.ge.s32.totalorder %s146, 1
                  %s151 = sphi %s114, %s114
                  %s152 = sphi %s111, %s111
                $region46: #{_snow_forward.3} parent=42 // loop_header_branch
                  %149 = sbr.rel (%p147) target = $region50
                $region47: #{_snow_forward.3} parent=42 // loop_body
                  %v153 = vld [vmem:[%s151] sm:$0xff]
                  %154 = vst [vmem:[%s152] sm:$0xff] %v153
                  %v155 = vld [vmem:[%s151 + $0x8] sm:$0xff]
                  %156 = vst [vmem:[%s152 + $0x8] sm:$0xff] %v155
                  %v157 = vld [vmem:[%s151 + $0x20] sm:$0xff]
                  %158 = vst [vmem:[%s152 + $0x10] sm:$0xff] %v157
                  %v159 = vld [vmem:[%s151 + $0x28] sm:$0xff]
                  %160 = vst [vmem:[%s152 + $0x18] sm:$0xff] %v159
                  %v161 = vld [vmem:[%s151 + $0x40] sm:$0xff]
                  %162 = vst [vmem:[%s152 + $0x20] sm:$0xff] %v161
                  %v163 = vld [vmem:[%s151 + $0x48] sm:$0xff]
                  %164 = vst [vmem:[%s152 + $0x28] sm:$0xff] %v163
                $region48: #{_snow_forward.3} parent=42 // loop_footer
                  %s150 = sadd.s32 1, %s146
                $region49: #{_snow_forward.3} parent=42 // loop_footer_branch
                  %145 = sbr.rel target = $region45
                $region50: #{_snow_forward.3} parent=42 // loop_exit
                  _
              $region43: #{_snow_forward.3} parent=27 // pred_fallthru
                _
              // Predicated region
              $region51: #{_snow_forward.3} parent=27 // pred_check
                _
              $region52: #{_snow_forward.3} parent=27 // pred_check_branch
                %166 = sbr.rel target = $region54
              $region53: #{_snow_forward.3} parent=27 // pred_region
                _
              $region54: #{_snow_forward.3} parent=27 // pred_fallthru
                _
            $region28: #{_snow_forward.3} parent=23 // pred_fallthru
              _
            // Predicated region
            $region29: #{_snow_forward.3} parent=23 // pred_check
              _
            $region30: #{_snow_forward.3} parent=23 // pred_check_branch
              %120 = sbr.rel target = $region32
            $region31: #{_snow_forward.3} parent=23 // pred_region
              %s122 = ssub.s32 256, 1
              loop: start=0, step=1, limit=1
              $region33: #{_snow_forward.3} parent=31 // loop_pre_header
                _
              $region34: #{_snow_forward.3} parent=31 // loop_header
                %s124 = sphi 0, %s128
                %p125 = scmp.ge.s32.totalorder %s124, 1
                %s129 = sphi %s114, %s114
                %s130 = sphi %s111, %s111
              $region35: #{_snow_forward.3} parent=31 // loop_header_branch
                %127 = sbr.rel (%p125) target = $region39
              $region36: #{_snow_forward.3} parent=31 // loop_body
                %v131 = vld [vmem:[%s129] sm:%s122]
                %132 = vst [vmem:[%s130] sm:%s122] %v131
                %v133 = vld [vmem:[%s129 + $0x8] sm:%s122]
                %134 = vst [vmem:[%s130 + $0x8] sm:%s122] %v133
                %v135 = vld [vmem:[%s129 + $0x20] sm:%s122]
                %136 = vst [vmem:[%s130 + $0x10] sm:%s122] %v135
                %v137 = vld [vmem:[%s129 + $0x28] sm:%s122]
                %138 = vst [vmem:[%s130 + $0x18] sm:%s122] %v137
                %v139 = vld [vmem:[%s129 + $0x40] sm:%s122]
                %140 = vst [vmem:[%s130 + $0x20] sm:%s122] %v139
                %v141 = vld [vmem:[%s129 + $0x48] sm:%s122]
                %142 = vst [vmem:[%s130 + $0x28] sm:%s122] %v141
              $region37: #{_snow_forward.3} parent=31 // loop_footer
                %s128 = sadd.s32 1, %s124
              $region38: #{_snow_forward.3} parent=31 // loop_footer_branch
                %123 = sbr.rel target = $region34
              $region39: #{_snow_forward.3} parent=31 // loop_exit
                _
            $region32: #{_snow_forward.3} parent=23 // pred_fallthru
              _
          $region24: #{_snow_forward.3} parent=19 // pred_fallthru
            _
          %167 = vnop
        $region20: #{_snow_forward.3} parent=15 // pred_fallthru
          _
        // Predicated region
        $region55: #{_snow_forward.3} parent=15 // pred_check
          %p168 = pneg %p54
        $region56: #{_snow_forward.3} parent=15 // pred_check_branch
          %170 = sbr.rel (%p168) target = $region58
        $region57: #{_snow_forward.3} parent=15 // pred_region
          %s171 = smul.u32 2, %s8
          %p172 = scmp.lt.s32.totalorder %s171, 3
          %s173 = scalar_select %p172, %s171, 3
          %s174 = smul.addr %s173, 8
          %s175 = scalar_lea.vmem %s1, %s174
          %s176 = smul.u32 2, %s8
        $region58: #{_snow_forward.3} parent=15 // pred_fallthru
          _
      $region16: #{_snow_forward.3} parent=5 // pred_fallthru
        _
      %p177 = scmp.le.s32.totalorder 1, %s8
      %p178 = scmp.lt.s32.totalorder %s8, 3
      %p179 = pnand %p177, %p178
      %p180 = pneg %p179
      // Predicated region
      $region59: #{_snow_forward.3} parent=5 // pred_check
        _
      $region60: #{_snow_forward.3} parent=5 // pred_check_branch
        %182 = sbr.rel (%p179) target = $region62
      $region61: #{_snow_forward.3} parent=5 // pred_region
        %s183 = ssub.s32 %s8, 1
        %s184 = sand.u32 %s21, 1
        %s185 = sand.u32 %s21, 1
        %s186 = smul.addr %s185, 48
        %s187 = scalar_lea.vmem [#allocation2], %s186
        // Predicated region
        $region63: #{_snow_forward.3} parent=61 // pred_check
          %p188 = pneg %p34
        $region64: #{_snow_forward.3} parent=61 // pred_check_branch
          %190 = sbr.rel (%p188) target = $region66
        $region65: #{_snow_forward.3} parent=61 // pred_region
          _
        $region66: #{_snow_forward.3} parent=61 // pred_fallthru
          _
        %s191 = sand.u32 %s21, 1
        %s192 = sand.u32 %s21, 1
        %s193 = smul.addr %s192, 48
        %s194 = scalar_lea.vmem [#allocation2], %s193
        %p195 = pneg %p34
        %p196 = pneg %p31
        %s197 = smul.u32 2, %s13
        %p198 = scmp.lt.s32.totalorder %s197, 3
        %s199 = scalar_select %p198, %s197, 3
        %s200 = smul.addr %s199, 8
        %s201 = scalar_lea.vmem %s1, %s200
        %p202 = pneg %p60
        %p203 = pneg %p57
        %p204 = pneg %p86
        %p205 = pneg %p83
        %s206 = sand.u32 %s73, 1
        %s207 = sand.u32 %s73, 1
        %s208 = smul.addr %s207, 48
        %s209 = scalar_lea.vmem [#allocation3], %s208
        %s210 = smul.u32 2, %s13
        %s211 = smul.u32 2, %s13
        %p212 = scmp.lt.s32.totalorder %s211, 3
        %s213 = scalar_select %p212, %s211, 3
        %s214 = smul.addr %s213, 8
        %s215 = scalar_lea.vmem %s1, %s214
        %s216 = smul.u32 2, %s13
        %s217 = smul.u32 2, %s13
        %v218 = vld [vmem:[%s187] sm:$0xff]
        %v219 = vld [vmem:[%s187 + $0x8] sm:$0xff]
        %v220 = vld [vmem:[%s187 + $0x10] sm:$0xff]
        %v221 = vld [vmem:[%s187 + $0x18] sm:$0xff]
        %v222 = vld [vmem:[%s187 + $0x20] sm:$0xff]
        %v223 = vld [vmem:[%s187 + $0x28] sm:$0xff]
        %v224 = vld [vmem:[%s215] sm:$0xff]
        %v225 = vld [vmem:[%s215 + $0x8] sm:$0xff]
        %v226 = vmul.f32 %v218, 0.299
        %v227 = vmul.f32 %v219, 0.299
        %v228 = vmul.f32 %v220, 0.587
        %v229 = vmul.f32 %v221, 0.587
        %v230 = vadd.f32 %v226, %v228
        %v231 = vadd.f32 %v227, %v229
        %v232 = vmul.f32 %v222, 0.114
        %v233 = vmul.f32 %v223, 0.114
        %v234 = vadd.f32 %v230, %v232
        %v235 = vadd.f32 %v231, %v233
        %v236 = vmul.f32 %v234, 1.5
        %v237 = vmul.f32 %v235, 1.5
        %v238 = vadd.f32 %v236, 0.5
        %v239 = vadd.f32 %v237, 0.5
        %v240 = vmul.f32 %v218, 0.7
        %v241 = vmul.f32 %v219, 0.7
        %v242 = vmul.f32 %v220, 0.7
        %v243 = vmul.f32 %v221, 0.7
        %v244 = vmul.f32 %v222, 0.7
        %v245 = vmul.f32 %v223, 0.7
        %v246 = vmax.f32 %v218, %v238
        %v247 = vmax.f32 %v219, %v239
        %v248 = vmax.f32 %v220, %v238
        %v249 = vmax.f32 %v221, %v239
        %v250 = vmax.f32 %v222, %v238
        %v251 = vmax.f32 %v223, %v239
        %v252 = vmul.f32 %v246, 0.3
        %v253 = vmul.f32 %v247, 0.3
        %v254 = vmul.f32 %v248, 0.3
        %v255 = vmul.f32 %v249, 0.3
        %v256 = vmul.f32 %v250, 0.3
        %v257 = vmul.f32 %v251, 0.3
        %v258 = vadd.f32 %v240, %v252
        %v259 = vadd.f32 %v241, %v253
        %v260 = vadd.f32 %v242, %v254
        %v261 = vadd.f32 %v243, %v255
        %v262 = vadd.f32 %v244, %v256
        %v263 = vadd.f32 %v245, %v257
        %v264 = vadd.f32 %v258, %v224
        %v265 = vadd.f32 %v259, %v225
        %v266 = vadd.f32 %v260, %v224
        %v267 = vadd.f32 %v261, %v225
        %v268 = vadd.f32 %v262, %v224
        %v269 = vadd.f32 %v263, %v225
        %v270 = vmax.f32 %v264, 0.0
        %v271 = vmax.f32 %v265, 0.0
        %v272 = vmax.f32 %v266, 0.0
        %v273 = vmax.f32 %v267, 0.0
        %v274 = vmax.f32 %v268, 0.0
        %v275 = vmax.f32 %v269, 0.0
        %v276 = vmin.f32 %v270, 1.0
        %v277 = vmin.f32 %v271, 1.0
        %v278 = vmin.f32 %v272, 1.0
        %v279 = vmin.f32 %v273, 1.0
        %v280 = vmin.f32 %v274, 1.0
        %v281 = vmin.f32 %v275, 1.0
        %282 = vst [vmem:[%s209] sm:$0xff] %v276
        %283 = vst [vmem:[%s209 + $0x8] sm:$0xff] %v277
        %284 = vst [vmem:[%s209 + $0x10] sm:$0xff] %v278
        %285 = vst [vmem:[%s209 + $0x18] sm:$0xff] %v279
        %286 = vst [vmem:[%s209 + $0x20] sm:$0xff] %v280
        %287 = vst [vmem:[%s209 + $0x28] sm:$0xff] %v281
        %s288 = sand.u32 %s73, 1
        %s289 = sand.u32 %s73, 1
        %s290 = smul.addr %s289, 48
        %s291 = scalar_lea.vmem [#allocation3], %s290
        // Predicated region
        $region67: #{_snow_forward.3} parent=61 // pred_check
          %p292 = pneg %p83
        $region68: #{_snow_forward.3} parent=61 // pred_check_branch
          %294 = sbr.rel (%p292) target = $region70
        $region69: #{_snow_forward.3} parent=61 // pred_region
          %s295 = smul.u32 2, %s13
          %s296 = smul.addr %s295, 8
          %s297 = scalar_lea.vmem %s2, %s296
          // Predicated region
          $region71: #{_snow_forward.3} parent=69 // pred_check
            _
          $region72: #{_snow_forward.3} parent=69 // pred_check_branch
            %299 = sbr.rel (0) target = $region74
          $region73: #{_snow_forward.3} parent=69 // pred_region
            // Predicated region
            $region75: #{_snow_forward.3} parent=73 // pred_check
              _
            $region76: #{_snow_forward.3} parent=73 // pred_check_branch
              %301 = sbr.rel (0) target = $region78
            $region77: #{_snow_forward.3} parent=73 // pred_region
              // Predicated region
              $region90: #{_snow_forward.3} parent=77 // pred_check
                _
              $region91: #{_snow_forward.3} parent=77 // pred_check_branch
                %327 = sbr.rel (0) target = $region93
              $region92: #{_snow_forward.3} parent=77 // pred_region
                loop: start=0, step=1, limit=1
                $region94: #{_snow_forward.3} parent=92 // loop_pre_header
                  _
                $region95: #{_snow_forward.3} parent=92 // loop_header
                  %s329 = sphi 0, %s333
                  %p330 = scmp.ge.s32.totalorder %s329, 1
                  %s334 = sphi %s291, %s291
                  %s335 = sphi %s297, %s297
                $region96: #{_snow_forward.3} parent=92 // loop_header_branch
                  %332 = sbr.rel (%p330) target = $region100
                $region97: #{_snow_forward.3} parent=92 // loop_body
                  %v336 = vld [vmem:[%s334] sm:$0xff]
                  %337 = vst [vmem:[%s335] sm:$0xff] %v336
                  %v338 = vld [vmem:[%s334 + $0x8] sm:$0xff]
                  %339 = vst [vmem:[%s335 + $0x8] sm:$0xff] %v338
                  %v340 = vld [vmem:[%s334 + $0x10] sm:$0xff]
                  %341 = vst [vmem:[%s335 + $0x20] sm:$0xff] %v340
                  %v342 = vld [vmem:[%s334 + $0x18] sm:$0xff]
                  %343 = vst [vmem:[%s335 + $0x28] sm:$0xff] %v342
                  %v344 = vld [vmem:[%s334 + $0x20] sm:$0xff]
                  %345 = vst [vmem:[%s335 + $0x40] sm:$0xff] %v344
                  %v346 = vld [vmem:[%s334 + $0x28] sm:$0xff]
                  %347 = vst [vmem:[%s335 + $0x48] sm:$0xff] %v346
                $region98: #{_snow_forward.3} parent=92 // loop_footer
                  %s333 = sadd.s32 1, %s329
                $region99: #{_snow_forward.3} parent=92 // loop_footer_branch
                  %328 = sbr.rel target = $region95
                $region100: #{_snow_forward.3} parent=92 // loop_exit
                  _
              $region93: #{_snow_forward.3} parent=77 // pred_fallthru
                _
              // Predicated region
              $region101: #{_snow_forward.3} parent=77 // pred_check
                _
              $region102: #{_snow_forward.3} parent=77 // pred_check_branch
                %349 = sbr.rel target = $region104
              $region103: #{_snow_forward.3} parent=77 // pred_region
                _
              $region104: #{_snow_forward.3} parent=77 // pred_fallthru
                _
            $region78: #{_snow_forward.3} parent=73 // pred_fallthru
              _
            // Predicated region
            $region79: #{_snow_forward.3} parent=73 // pred_check
              _
            $region80: #{_snow_forward.3} parent=73 // pred_check_branch
              %303 = sbr.rel target = $region82
            $region81: #{_snow_forward.3} parent=73 // pred_region
              %s305 = ssub.s32 256, 1
              loop: start=0, step=1, limit=1
              $region83: #{_snow_forward.3} parent=81 // loop_pre_header
                _
              $region84: #{_snow_forward.3} parent=81 // loop_header
                %s307 = sphi 0, %s311
                %p308 = scmp.ge.s32.totalorder %s307, 1
                %s312 = sphi %s291, %s291
                %s313 = sphi %s297, %s297
              $region85: #{_snow_forward.3} parent=81 // loop_header_branch
                %310 = sbr.rel (%p308) target = $region89
              $region86: #{_snow_forward.3} parent=81 // loop_body
                %v314 = vld [vmem:[%s312] sm:%s305]
                %315 = vst [vmem:[%s313] sm:%s305] %v314
                %v316 = vld [vmem:[%s312 + $0x8] sm:%s305]
                %317 = vst [vmem:[%s313 + $0x8] sm:%s305] %v316
                %v318 = vld [vmem:[%s312 + $0x10] sm:%s305]
                %319 = vst [vmem:[%s313 + $0x20] sm:%s305] %v318
                %v320 = vld [vmem:[%s312 + $0x18] sm:%s305]
                %321 = vst [vmem:[%s313 + $0x28] sm:%s305] %v320
                %v322 = vld [vmem:[%s312 + $0x20] sm:%s305]
                %323 = vst [vmem:[%s313 + $0x40] sm:%s305] %v322
                %v324 = vld [vmem:[%s312 + $0x28] sm:%s305]
                %325 = vst [vmem:[%s313 + $0x48] sm:%s305] %v324
              $region87: #{_snow_forward.3} parent=81 // loop_footer
                %s311 = sadd.s32 1, %s307
              $region88: #{_snow_forward.3} parent=81 // loop_footer_branch
                %306 = sbr.rel target = $region84
              $region89: #{_snow_forward.3} parent=81 // loop_exit
                _
            $region82: #{_snow_forward.3} parent=73 // pred_fallthru
              _
          $region74: #{_snow_forward.3} parent=69 // pred_fallthru
            _
          %350 = vnop
        $region70: #{_snow_forward.3} parent=61 // pred_fallthru
          _
      $region62: #{_snow_forward.3} parent=5 // pred_fallthru
        _
      %p351 = scmp.le.s32.totalorder 2, %s8
      // Predicated region
      $region105: #{_snow_forward.3} parent=5 // pred_check
        %p352 = pneg %p351
      $region106: #{_snow_forward.3} parent=5 // pred_check_branch
        %354 = sbr.rel (%p352) target = $region108
      $region107: #{_snow_forward.3} parent=5 // pred_region
        %s355 = ssub.s32 %s8, 2
        // Predicated region
        $region109: #{_snow_forward.3} parent=107 // pred_check
          %p356 = pneg %p89
        $region110: #{_snow_forward.3} parent=107 // pred_check_branch
          %358 = sbr.rel (%p356) target = $region112
        $region111: #{_snow_forward.3} parent=107 // pred_region
          %s359 = sand.u32 %s74, 1
          %s360 = sand.u32 %s74, 1
          %s361 = smul.addr %s360, 48
          %s362 = scalar_lea.vmem [#allocation3], %s361
        $region112: #{_snow_forward.3} parent=107 // pred_fallthru
          _
      $region108: #{_snow_forward.3} parent=5 // pred_fallthru
        _
    $region6: #{_snow_forward.3} parent=1 // loop_footer
      %s12 = sadd.s32 1, %s8
    $region7: #{_snow_forward.3} parent=1 // loop_footer_branch
      %7 = sbr.rel target = $region3
    $region8: #{_snow_forward.3} parent=1 // loop_exit
      _

</llo_original>
